<compile_context>
chip_gen: v5e
topology: v5e:2x2
jax: 0.10.0
libtpu: 0.0.40
codegen_flags: <defaults>
</compile_context>

<pallas_src>
import functools

import jax
import jax.numpy as jnp
from jax.experimental import pallas as pl
from jax.experimental.pallas import tpu as pltpu

_LANES = 128


def _focal_ce_kernel(logits_ref, targets_ref, psum_ref, m_scr, l_scr, t_scr,
                     *, n, c, tile_n, tile_c):
    """Online-logsumexp CE over (batch-tile, class-tile) grid.

    Writes one lane-dense (1, 128) partial CE sum per batch tile (on the last
    class step).
    """
    i = pl.program_id(0)          # batch-tile index ("parallel")
    k = pl.program_id(1)          # class-tile index ("arbitrary", innermost)
    nk = pl.num_programs(1)

    @pl.when(k == 0)
    def _init():
        m_scr[...] = jnp.full_like(m_scr, -jnp.inf)
        l_scr[...] = jnp.zeros_like(l_scr)
        t_scr[...] = jnp.zeros_like(t_scr)

    x = logits_ref[...].astype(jnp.float32)       # (tile_n, tile_c) upcast in-kernel
    t = targets_ref[...]                          # (tile_n, 1) int32

    # Global class index shaped (1, tile_c); broadcasting does the compare
    # against t -> no full (tile_n, tile_c) int32 temporary.
    col = k * tile_c + jax.lax.broadcasted_iota(jnp.int32, (1, tile_c), 1)
    # Mask padded class columns (remainder C tile) to -inf BEFORE max/exp.
    x = jnp.where(col < c, x, -jnp.inf)

    # Online (flash-style) logsumexp across the class grid axis.
    m_prev = m_scr[...]
    m_new = jnp.maximum(m_prev, jnp.max(x, axis=-1, keepdims=True))
    l_scr[...] = (l_scr[...] * jnp.exp(m_prev - m_new)
                  + jnp.sum(jnp.exp(x - m_new), axis=-1, keepdims=True))
    m_scr[...] = m_new
    # Target-class logit via one-hot compare (at most one class tile matches).
    t_scr[...] = t_scr[...] + jnp.sum(jnp.where(col == t, x, 0.0),
                                      axis=-1, keepdims=True)

    @pl.when(k == nk - 1)
    def _finalize():
        ce = m_scr[...] + jnp.log(l_scr[...]) - t_scr[...]        # (tile_n, 1)
        # Mask rows past the true batch size with a TRUE select (padded rows can
        # hold inf/NaN garbage) BEFORE the reduction.
        row = i * tile_n + jax.lax.broadcasted_iota(jnp.int32, ce.shape, 0)
        ce = jnp.where(row < n, ce, 0.0)
        psum = jnp.sum(ce, axis=0, keepdims=True)                  # (1, 1)
        psum_ref[...] = jnp.broadcast_to(psum, psum_ref.shape)     # lane-dense store


def _choose_tile_c(c):
    """Single lane-dense class block when it fits; else 1024-wide C tiles."""
    if c <= 2048:
        return c
    return 1024                     # multiple of 128 -> valid partial blocks


def _choose_tile_n(n, tile_c, itemsize):
    """Batch tile: ~2 MiB f32-equivalent logits, dtype-aware sublane alignment."""
    pack = max(1, 4 // max(1, itemsize))   # rows per sublane: f32=1, bf16=2, i8=4
    align = 8 * pack                       # 8 / 16 / 32
    if n <= 2 * align:
        return n                           # tiny batch: one full-extent block
    budget_f32 = 2 * 1024 * 1024           # f32-equivalent logits bytes per block
    t = budget_f32 // (tile_c * 4)
    t = (t // align) * align
    t = max(align, min(t, 2048))           # cap: (tile_n, 1) buffers pad to 128 lanes
    # Aim for >= 2 batch tiles so both v7x TensorCores get work and DMA pipelines.
    half = ((n + 1) // 2 + align - 1) // align * align
    return max(align, min(t, half))


def focal_loss(logits, targets, alpha=1.0, gamma=2.0):
    """Pallas equivalent of FocalLoss().forward(inputs, targets).

    logits:  (N, C) float (any float dtype; NOT cast on the host)
    targets: (N,)   int class indices
    returns: scalar float32
    """
    n, c = logits.shape
    targets_2d = targets.reshape(n, 1).astype(jnp.int32)

    itemsize = jnp.dtype(logits.dtype).itemsize
    tile_c = _choose_tile_c(c)
    tile_n = _choose_tile_n(n, tile_c, itemsize)
    n_tiles = -(-n // tile_n)
    c_tiles = -(-c // tile_c)

    kernel = functools.partial(_focal_ce_kernel, n=n, c=c,
                               tile_n=tile_n, tile_c=tile_c)

    bytes_accessed = (n * c * itemsize          # logits read (native dtype)
                      + n * 4                   # targets read
                      + n_tiles * _LANES * 4)   # tiny partial-sum writeback
    cost = pl.CostEstimate(flops=6 * n * c, transcendentals=n * c,
                           bytes_accessed=bytes_accessed)

    partials = pl.pallas_call(
        kernel,
        out_shape=jax.ShapeDtypeStruct((1, n_tiles * _LANES), jnp.float32),
        grid=(n_tiles, c_tiles),                       # reduction (C) axis last
        in_specs=[
            pl.BlockSpec((tile_n, tile_c), lambda i, k: (i, k)),   # logits, native dtype
            pl.BlockSpec((tile_n, 1), lambda i, k: (i, 0)),        # targets (per batch tile)
        ],
        out_specs=pl.BlockSpec((1, _LANES), lambda i, k: (0, i)),  # lane-dense partials
        scratch_shapes=[pltpu.VMEM((tile_n, 1), jnp.float32)] * 3,  # m, l, tgt-logit
        compiler_params=pltpu.CompilerParams(
            dimension_semantics=("parallel", "arbitrary"),  # batch parallel (v7x megacore)
            vmem_limit_bytes=48 * 1024 * 1024,              # > scoped defaults, < v7x 64 MiB
        ),
        cost_estimate=cost,
    )(logits, targets_2d)

    # Scalar epilogue in plain JAX: mean CE + focal transform (negligible work).
    ce = jnp.sum(partials.reshape(n_tiles, _LANES)[:, 0]) / jnp.float32(n)
    pt = jnp.exp(-ce)
    one_minus_pt = jnp.maximum(1.0 - pt, 0.0)   # guard tiny negative when ce ~ 0

    g = float(gamma)
    if g == int(g) and 0 <= int(g) <= 4:
        # Multiply chain instead of pow for small integer gamma (gamma=2 default).
        mod = jnp.float32(1.0)
        for _ in range(int(g)):
            mod = mod * one_minus_pt
    else:
        mod = one_minus_pt ** jnp.float32(gamma)

    return jnp.float32(alpha) * mod * ce


def _reference_focal_loss(logits, targets, alpha=1.0, gamma=2.0):
    # Pure-JAX reference (matches torch: focal transform applied to the mean CE).
    lse = jax.scipy.special.logsumexp(logits.astype(jnp.float32), axis=-1)
    tgt = jnp.take_along_axis(logits.astype(jnp.float32),
                              targets[:, None], axis=-1)[:, 0]
    ce = jnp.mean(lse - tgt)
    pt = jnp.exp(-ce)
    return alpha * (1.0 - pt) ** gamma * ce


if __name__ == "__main__":
    key = jax.random.PRNGKey(0)
    k1, k2, k3, k4 = jax.random.split(key, 4)

    # --- small shape consistent with the module: batch of logits over classes ---
    N, C = 16, 32
    logits_f32 = jax.random.normal(k1, (N, C), dtype=jnp.float32)
    targets = jax.random.randint(k2, (N,), 0, C, dtype=jnp.int32)

    out = jax.block_until_ready(focal_loss(logits_f32, targets, alpha=1.0, gamma=2.0))
    ref = _reference_focal_loss(logits_f32, targets, alpha=1.0, gamma=2.0)
    assert jnp.allclose(out, ref, rtol=1e-5, atol=1e-6), (out, ref)

    # bf16 path: no host-side f32 cast; upcast happens inside the kernel.
    logits_bf16 = logits_f32.astype(jnp.bfloat16)
    out_bf = jax.block_until_ready(focal_loss(logits_bf16, targets, alpha=1.0, gamma=2.0))
    ref_bf = _reference_focal_loss(logits_bf16, targets, alpha=1.0, gamma=2.0)
    assert jnp.allclose(out_bf, ref_bf, rtol=1e-4, atol=1e-5), (out_bf, ref_bf)

    # Exercise multi-tile batch + C-blocked online logsumexp + remainder masking.
    N2, C2 = 100, 2600
    logits2 = jax.random.normal(k3, (N2, C2), dtype=jnp.float32)
    targets2 = jax.random.randint(k4, (N2,), 0, C2, dtype=jnp.int32)
    out2 = jax.block_until_ready(focal_loss(logits2, targets2, alpha=1.0, gamma=2.0))
    ref2 = _reference_focal_loss(logits2, targets2, alpha=1.0, gamma=2.0)
    assert jnp.allclose(out2, ref2, rtol=1e-4, atol=1e-5), (out2, ref2)

    print("KERNEL_OK")
</pallas_src>

<mosaic_0001>
module attributes {stable_mosaic.version = 11 : i64} {
  func.func @_focal_ce_kernel(%arg0: i32, %arg1: i32, %arg2: memref<16x32xf32, #tpu.memory_space<vmem>>, %arg3: memref<16x1xi32, #tpu.memory_space<vmem>>, %arg4: memref<1x128xf32, #tpu.memory_space<vmem>>, %arg5: memref<16x1xf32, #tpu.memory_space<vmem>>, %arg6: memref<16x1xf32, #tpu.memory_space<vmem>>, %arg7: memref<16x1xf32, #tpu.memory_space<vmem>>) attributes {dimension_semantics = [#tpu.dimension_semantics<parallel>, #tpu.dimension_semantics<arbitrary>], iteration_bounds = array<i64: 1, 1>, scalar_prefetch = 0 : i64, scratch_operands = 3 : i64, tpu.core_type = #tpu.core_type<tc>, window_params = [{transform_indices = @transform_0, window_bounds = array<i64: 16, 32>}, {transform_indices = @transform_1, window_bounds = array<i64: 16, 1>}, {transform_indices = @transform_2, window_bounds = array<i64: 1, 128>}]} {
    %c0_i32 = arith.constant 0 : i32
    %0 = arith.cmpi eq, %arg1, %c0_i32 : i32
    %1 = arith.extui %0 : i1 to i32
    %c0_i32_0 = arith.constant 0 : i32
    %2 = arith.cmpi ne, %1, %c0_i32_0 : i32
    scf.if %2 {
      %cst_23 = arith.constant 0xFF800000 : f32
      %44 = vector.broadcast %cst_23 : f32 to vector<16x1xf32>
      %c0_24 = arith.constant 0 : index
      %c0_25 = arith.constant 0 : index
      %45 = vector.load %arg5[%c0_24, %c0_25] : memref<16x1xf32, #tpu.memory_space<vmem>>, vector<16x1xf32>
      tpu.vector_store %arg5[%c0_24, %c0_25], %44 {strides = array<i32>} : memref<16x1xf32, #tpu.memory_space<vmem>>, vector<16x1xf32>,
      %cst_26 = arith.constant 0.000000e+00 : f32
      %46 = vector.broadcast %cst_26 : f32 to vector<16x1xf32>
      %c0_27 = arith.constant 0 : index
      %c0_28 = arith.constant 0 : index
      %47 = vector.load %arg6[%c0_27, %c0_28] : memref<16x1xf32, #tpu.memory_space<vmem>>, vector<16x1xf32>
      tpu.vector_store %arg6[%c0_27, %c0_28], %46 {strides = array<i32>} : memref<16x1xf32, #tpu.memory_space<vmem>>, vector<16x1xf32>,
      %cst_29 = arith.constant 0.000000e+00 : f32
      %48 = vector.broadcast %cst_29 : f32 to vector<16x1xf32>
      %c0_30 = arith.constant 0 : index
      %c0_31 = arith.constant 0 : index
      %49 = vector.load %arg7[%c0_30, %c0_31] : memref<16x1xf32, #tpu.memory_space<vmem>>, vector<16x1xf32>
      tpu.vector_store %arg7[%c0_30, %c0_31], %48 {strides = array<i32>} : memref<16x1xf32, #tpu.memory_space<vmem>>, vector<16x1xf32>,
    } else {
    }
    %c0 = arith.constant 0 : index
    %c0_1 = arith.constant 0 : index
    %3 = vector.load %arg2[%c0, %c0_1] : memref<16x32xf32, #tpu.memory_space<vmem>>, vector<16x32xf32>
    %c0_2 = arith.constant 0 : index
    %c0_3 = arith.constant 0 : index
    %4 = vector.load %arg3[%c0_2, %c0_3] : memref<16x1xi32, #tpu.memory_space<vmem>>, vector<16x1xi32>
    %c32_i32 = arith.constant 32 : i32
    %5 = arith.muli %arg1, %c32_i32 : i32
    %6 = tpu.iota {dimensions = array<i32: 1>} : vector<1x32xi32>
    %7 = vector.broadcast %5 : i32 to vector<1x32xi32>
    %8 = arith.addi %7, %6 : vector<1x32xi32>
    %c32_i32_4 = arith.constant 32 : i32
    %9 = vector.broadcast %c32_i32_4 : i32 to vector<1x32xi32>
    %10 = arith.cmpi slt, %8, %9 : vector<1x32xi32>
    %cst = arith.constant 0xFF800000 : f32
    %11 = vector.shape_cast %10 : vector<1x32xi1> to vector<1x32xi1>
    %12 = vector.broadcast %11 : vector<1x32xi1> to vector<16x32xi1>
    %13 = vector.broadcast %cst : f32 to vector<16x32xf32>
    %14 = arith.select %12, %3, %13 : vector<16x32xi1>, vector<16x32xf32>
    %c0_5 = arith.constant 0 : index
    %c0_6 = arith.constant 0 : index
    %15 = vector.load %arg5[%c0_5, %c0_6] : memref<16x1xf32, #tpu.memory_space<vmem>>, vector<16x1xf32>
    %cst_7 = arith.constant dense<0xFF800000> : vector<16xf32>
    %16 = vector.multi_reduction <maximumf>, %14, %cst_7 [1] : vector<16x32xf32> to vector<16xf32>
    %17 = vector.shape_cast %16 : vector<16xf32> to vector<16x1xf32>
    %18 = arith.maximumf %15, %17 : vector<16x1xf32>
    %c0_8 = arith.constant 0 : index
    %c0_9 = arith.constant 0 : index
    %19 = vector.load %arg6[%c0_8, %c0_9] : memref<16x1xf32, #tpu.memory_space<vmem>>, vector<16x1xf32>
    %20 = arith.subf %15, %18 : vector<16x1xf32>
    %21 = math.exp %20 : vector<16x1xf32>
    %22 = arith.mulf %19, %21 : vector<16x1xf32>
    %23 = vector.broadcast %18 : vector<16x1xf32> to vector<16x32xf32>
    %24 = arith.subf %14, %23 : vector<16x32xf32>
    %25 = math.exp %24 : vector<16x32xf32>
    %cst_10 = arith.constant dense<0.000000e+00> : vector<16xf32>
    %26 = vector.multi_reduction <add>, %25, %cst_10 [1] : vector<16x32xf32> to vector<16xf32>
    %27 = vector.shape_cast %26 : vector<16xf32> to vector<16x1xf32>
    %28 = arith.addf %22, %27 : vector<16x1xf32>
    %c0_11 = arith.constant 0 : index
    %c0_12 = arith.constant 0 : index
    %29 = vector.load %arg6[%c0_11, %c0_12] : memref<16x1xf32, #tpu.memory_space<vmem>>, vector<16x1xf32>
    tpu.vector_store %arg6[%c0_11, %c0_12], %28 {strides = array<i32>} : memref<16x1xf32, #tpu.memory_space<vmem>>, vector<16x1xf32>,
    %c0_13 = arith.constant 0 : index
    %c0_14 = arith.constant 0 : index
    %30 = vector.load %arg5[%c0_13, %c0_14] : memref<16x1xf32, #tpu.memory_space<vmem>>, vector<16x1xf32>
    tpu.vector_store %arg5[%c0_13, %c0_14], %18 {strides = array<i32>} : memref<16x1xf32, #tpu.memory_space<vmem>>, vector<16x1xf32>,
    %c0_15 = arith.constant 0 : index
    %c0_16 = arith.constant 0 : index
    %31 = vector.load %arg7[%c0_15, %c0_16] : memref<16x1xf32, #tpu.memory_space<vmem>>, vector<16x1xf32>
    %32 = vector.broadcast %8 : vector<1x32xi32> to vector<16x32xi32>
    %33 = vector.broadcast %4 : vector<16x1xi32> to vector<16x32xi32>
    %34 = arith.cmpi eq, %32, %33 : vector<16x32xi32>
    %cst_17 = arith.constant 0.000000e+00 : f32
    %35 = vector.broadcast %cst_17 : f32 to vector<16x32xf32>
    %36 = arith.select %34, %14, %35 : vector<16x32xi1>, vector<16x32xf32>
    %cst_18 = arith.constant dense<0.000000e+00> : vector<16xf32>
    %37 = vector.multi_reduction <add>, %36, %cst_18 [1] : vector<16x32xf32> to vector<16xf32>
    %38 = vector.shape_cast %37 : vector<16xf32> to vector<16x1xf32>
    %39 = arith.addf %31, %38 : vector<16x1xf32>
    %c0_19 = arith.constant 0 : index
    %c0_20 = arith.constant 0 : index
    %40 = vector.load %arg7[%c0_19, %c0_20] : memref<16x1xf32, #tpu.memory_space<vmem>>, vector<16x1xf32>
    tpu.vector_store %arg7[%c0_19, %c0_20], %39 {strides = array<i32>} : memref<16x1xf32, #tpu.memory_space<vmem>>, vector<16x1xf32>,
    %c0_i32_21 = arith.constant 0 : i32
    %41 = arith.cmpi eq, %arg1, %c0_i32_21 : i32
    %42 = arith.extui %41 : i1 to i32
    %c0_i32_22 = arith.constant 0 : i32
    %43 = arith.cmpi ne, %42, %c0_i32_22 : i32
    scf.if %43 {
      %c0_23 = arith.constant 0 : index
      %c0_24 = arith.constant 0 : index
      %44 = vector.load %arg5[%c0_23, %c0_24] : memref<16x1xf32, #tpu.memory_space<vmem>>, vector<16x1xf32>
      %c0_25 = arith.constant 0 : index
      %c0_26 = arith.constant 0 : index
      %45 = vector.load %arg6[%c0_25, %c0_26] : memref<16x1xf32, #tpu.memory_space<vmem>>, vector<16x1xf32>
      %46 = math.log %45 : vector<16x1xf32>
      %47 = arith.addf %44, %46 : vector<16x1xf32>
      %c0_27 = arith.constant 0 : index
      %c0_28 = arith.constant 0 : index
      %48 = vector.load %arg7[%c0_27, %c0_28] : memref<16x1xf32, #tpu.memory_space<vmem>>, vector<16x1xf32>
      %49 = arith.subf %47, %48 : vector<16x1xf32>
      %c16_i32 = arith.constant 16 : i32
      %50 = arith.muli %arg0, %c16_i32 : i32
      %51 = tpu.iota {dimensions = array<i32: 0>} : vector<16x1xi32>
      %52 = vector.broadcast %50 : i32 to vector<16x1xi32>
      %53 = arith.addi %52, %51 : vector<16x1xi32>
      %c16_i32_29 = arith.constant 16 : i32
      %54 = vector.broadcast %c16_i32_29 : i32 to vector<16x1xi32>
      %55 = arith.cmpi slt, %53, %54 : vector<16x1xi32>
      %cst_30 = arith.constant 0.000000e+00 : f32
      %56 = vector.broadcast %cst_30 : f32 to vector<16x1xf32>
      %57 = arith.select %55, %49, %56 : vector<16x1xi1>, vector<16x1xf32>
      %cst_31 = arith.constant dense<0.000000e+00> : vector<1xf32>
      %58 = vector.multi_reduction <add>, %57, %cst_31 [0] : vector<16x1xf32> to vector<1xf32>
      %59 = vector.shape_cast %58 : vector<1xf32> to vector<1x1xf32>
      %60 = vector.shape_cast %59 : vector<1x1xf32> to vector<1x1xf32>
      %61 = vector.broadcast %60 : vector<1x1xf32> to vector<1x128xf32>
      %c0_32 = arith.constant 0 : index
      %c0_33 = arith.constant 0 : index
      %62 = vector.load %arg4[%c0_32, %c0_33] : memref<1x128xf32, #tpu.memory_space<vmem>>, vector<1x128xf32>
      tpu.vector_store %arg4[%c0_32, %c0_33], %61 {strides = array<i32>} : memref<1x128xf32, #tpu.memory_space<vmem>>, vector<1x128xf32>,
    } else {
    }
    return
  }
  func.func @transform_0(%arg0: i32, %arg1: i32) -> (i32, i32) {
    %c0_i32 = arith.constant 0 : i32
    return %arg0, %arg1 : i32, i32
  }
  func.func @transform_1(%arg0: i32, %arg1: i32) -> (i32, i32) {
    %c0_i32 = arith.constant 0 : i32
    %c0_i32_0 = arith.constant 0 : i32
    return %arg0, %c0_i32 : i32, i32
  }
  func.func @transform_2(%arg0: i32, %arg1: i32) -> (i32, i32) {
    %c0_i32 = arith.constant 0 : i32
    %c0_i32_0 = arith.constant 0 : i32
    return %c0_i32, %arg0 : i32, i32
  }
}

</mosaic_0001>

<llo_original>
// kernel: tpu_custom_call.1
$region0: #{tpu_custom_call.1}
  #allocation0 [shape = 'u32[]', space=smem, size = 0x4, offset = 0x4, fixed_abs, tag = 'smem constant byte address 0x4 - core index']
  #allocation1 [shape = 'u32[72,128]{1,0:T(1,128)}', space=vmem, size = 0x9000, scoped, tag = 'internal scratch']
  #allocation2 [shape = 'f32[16,1]{1,0:T(8,128)}', space=vmem, size = 0x2000, scoped, tag = 'scratch operand']
  #allocation3 [shape = 'f32[16,1]{1,0:T(8,128)}', space=vmem, size = 0x2000, scoped, tag = 'scratch operand']
  #allocation4 [shape = 'f32[16,1]{1,0:T(8,128)}', space=vmem, size = 0x2000, scoped, tag = 'scratch operand']
  %s0 = inlined_call_operand.vmem [shape: f32[16,32], index: 0, kind: input, shape index: {}]
  %s1 = inlined_call_operand.vmem [shape: s32[16,1], index: 1, kind: input, shape index: {}]
  %s2 = inlined_call_operand.hbm [shape: f32[1,128], index: 2, kind: output, shape index: {}]
  %s3 = sld [smem:[#allocation0]]
  $region26: #{tpu_custom_call.1} parent=0
    _
  %s5 = ssub.s32 1, %s3
  %s6 = scalar_select 0, %s5, %s3
  $region1: #{tpu_custom_call.1} parent=0
    #allocation5 [shape = 'u8[512]{0}', space=vmem, size = 0x400, scoped, tag = 'output window, operand 0, single buffered']
    #allocation6 [shape = 's32[1]{0}', space=sflag, size = 0x4, scoped, tag = 'scoped memory for tpu_custom_call.1']
    %7 = vsyncpa [#allocation6], 0
    // Predicated region
    $region2: #{tpu_custom_call.1} parent=1 // pred_check
      _
    $region3: #{tpu_custom_call.1} parent=1 // pred_check_branch
      %9 = sbr.rel (0) target = $region5
    $region4: #{tpu_custom_call.1} parent=1 // pred_region
      _
    $region5: #{tpu_custom_call.1} parent=1 // pred_fallthru
      _
    // Predicated region
    $region6: #{tpu_custom_call.1} parent=1 // pred_check
      _
    $region7: #{tpu_custom_call.1} parent=1 // pred_check_branch
      %11 = sbr.rel (0) target = $region9
    $region8: #{tpu_custom_call.1} parent=1 // pred_region
      _
    $region9: #{tpu_custom_call.1} parent=1 // pred_fallthru
      _
    %p12 = scmp.eq.s32.totalorder 0, 0
    // Predicated region
    $region10: #{tpu_custom_call.1} parent=1 // pred_check
      %p13 = pneg %p12
    $region11: #{tpu_custom_call.1} parent=1 // pred_check_branch
      %15 = sbr.rel (%p13) target = $region13
    $region12: #{tpu_custom_call.1} parent=1 // pred_region
      %vm16 = vcmask 7168
      %17 = vst.msk [vmem:[#allocation2] sm:$0xff] %vm16, -inf
      %18 = vst.msk [vmem:[#allocation2 + $0x8] sm:$0xff] %vm16, -inf
      %19 = vst.msk [vmem:[#allocation3] sm:$0xff] %vm16, 0.0
      %20 = vst.msk [vmem:[#allocation3 + $0x8] sm:$0xff] %vm16, 0.0
      %21 = vst.msk [vmem:[#allocation4] sm:$0xff] %vm16, 0.0
      %22 = vst.msk [vmem:[#allocation4 + $0x8] sm:$0xff] %vm16, 0.0
    $region13: #{tpu_custom_call.1} parent=1 // pred_fallthru
      _
    %v23 = vld [vmem:[%s0] sm:$0xff]
    %v24 = vld [vmem:[%s0 + $0x8] sm:$0xff]
    %v25 = vld [vmem:[%s1] sm:$0xff]
    %v26 = vld [vmem:[%s1 + $0x8] sm:$0xff]
    %s27 = smul.u32 0, 32
    %v28 = vlaneseq
    %v29 = vand.u32 %v28, 127
    %v30 = vstv %s27
    %v31 = vadd.s32 %v30, %v29
    %vm32 = vcmp.lt.s32.totalorder %v31, 32
    %v33 = vsel %vm32, 1, 0
    %vm34 = vcmp.eq.s32.totalorder %v33, 1
    %v35 = vsel %vm34, %v23, -inf
    %v36 = vsel %vm34, %v24, -inf
    %v37 = vld [vmem:[#allocation2] sm:$0xff]
    %v38 = vld [vmem:[#allocation2 + $0x8] sm:$0xff]
    %vm39 = vcmask 261120
    %v40 = vsel %vm39, %v35, -inf
    %41 = vmax.xlane.f32.xlu0 %v40
    %v42 = vpop.xlane.xlu0 %41
    %v43 = vsel %vm39, %v36, -inf
    %44 = vmax.xlane.f32.xlu0 %v43
    %v45 = vpop.xlane.xlu0 %44
    %v46 = vmax.f32 %v37, %v42
    %v47 = vmax.f32 %v38, %v45
    %v48 = vld [vmem:[#allocation3] sm:$0xff]
    %v49 = vld [vmem:[#allocation3 + $0x8] sm:$0xff]
    %v50 = vsub.f32 %v37, %v46
    %v51 = vsub.f32 %v38, %v47
    %v52 = vmul.f32 %v50, 1.442695
    %v53 = vpow.pop %v52
    %v54 = vmul.f32 %v51, 1.442695
    %v55 = vpow.pop %v54
    %v56 = vmul.f32 %v48, %v53
    %v57 = vmul.f32 %v49, %v55
    %59 = vset.pattern.permute.xlu0 0
    %60 = vperm.xlu0 %59, %v46
    %v61 = vpop.permute.xlu0 %60
    %64 = vset.pattern.permute.xlu0 0
    %65 = vperm.xlu0 %64, %v47
    %v66 = vpop.permute.xlu0 %65
    %v68 = vsub.f32 %v35, %v61
    %v69 = vsub.f32 %v36, %v66
    %v70 = vmul.f32 %v68, 1.442695
    %v71 = vpow.pop %v70
    %v72 = vmul.f32 %v69, 1.442695
    %v73 = vpow.pop %v72
    %v74 = vsel %vm39, %v71, 0.0
    %75 = vadd.xlane.f32.xlu0 %v74
    %v76 = vpop.xlane.xlu0 %75
    %v77 = vsel %vm39, %v73, 0.0
    %78 = vadd.xlane.f32.xlu0 %v77
    %v79 = vpop.xlane.xlu0 %78
    %v80 = vadd.f32 %v56, %v76
    %v81 = vadd.f32 %v57, %v79
    %vm82 = vcmask 7168
    %83 = vst.msk [vmem:[#allocation3] sm:$0xff] %vm82, %v80
    %84 = vst.msk [vmem:[#allocation3 + $0x8] sm:$0xff] %vm82, %v81
    %85 = vst.msk [vmem:[#allocation2] sm:$0xff] %vm82, %v46
    %86 = vst.msk [vmem:[#allocation2 + $0x8] sm:$0xff] %vm82, %v47
    %v87 = vld [vmem:[#allocation4] sm:$0xff]
    %v88 = vld [vmem:[#allocation4 + $0x8] sm:$0xff]
    %89 = vset.pattern.permute.xlu0 0
    %90 = vperm.xlu0 %89, %v25
    %v91 = vpop.permute.xlu0 %90
    %92 = vset.pattern.permute.xlu0 0
    %93 = vperm.xlu0 %92, %v26
    %v94 = vpop.permute.xlu0 %93
    %vm95 = vcmp.eq.s32.totalorder %v31, %v91
    %vm96 = vcmp.eq.s32.totalorder %v31, %v94
    %v97 = vsel %vm95, %v35, 0.0
    %v98 = vsel %vm96, %v36, 0.0
    %v99 = vsel %vm39, %v97, 0.0
    %100 = vadd.xlane.f32.xlu0 %v99
    %v101 = vpop.xlane.xlu0 %100
    %v102 = vsel %vm39, %v98, 0.0
    %103 = vadd.xlane.f32.xlu0 %v102
    %v104 = vpop.xlane.xlu0 %103
    %v105 = vadd.f32 %v87, %v101
    %v106 = vadd.f32 %v88, %v104
    %107 = vst.msk [vmem:[#allocation4] sm:$0xff] %vm82, %v105
    %108 = vst.msk [vmem:[#allocation4 + $0x8] sm:$0xff] %vm82, %v106
    // Predicated region
    $region14: #{tpu_custom_call.1} parent=1 // pred_check
      %p109 = pneg %p12
    $region15: #{tpu_custom_call.1} parent=1 // pred_check_branch
      %111 = sbr.rel (%p109) target = $region17
    $region16: #{tpu_custom_call.1} parent=1 // pred_region
      %v112 = vld [vmem:[#allocation2] sm:$0xff]
      %v113 = vld [vmem:[#allocation2 + $0x8] sm:$0xff]
      %v114 = vld [vmem:[#allocation3] sm:$0xff]
      %v115 = vld [vmem:[#allocation3 + $0x8] sm:$0xff]
      %v116 = vlog2.pop %v114
      %v117 = vmul.f32 %v116, 0.6931472
      %v118 = vlog2.pop %v115
      %v119 = vmul.f32 %v118, 0.6931472
      %v120 = vadd.f32 %v112, %v117
      %v121 = vadd.f32 %v113, %v119
      %v122 = vld [vmem:[#allocation4] sm:$0xff]
      %v123 = vld [vmem:[#allocation4 + $0x8] sm:$0xff]
      %v124 = vsub.f32 %v120, %v122
      %v125 = vsub.f32 %v121, %v123
      %s126 = smul.u32 0, 16
      %v127 = vlaneseq
      %v128 = vshrl.u32 %v127, 7
      %v129 = vadd.s32 %v128, 8
      %v130 = vstv %s126
      %v131 = vadd.s32 %v130, %v128
      %v132 = vadd.s32 %v130, %v129
      %vm133 = vcmp.lt.s32.totalorder %v131, 16
      %vm134 = vcmp.lt.s32.totalorder %v132, 16
      %v135 = vsel %vm133, %v124, 0.0
      %v136 = vsel %vm134, %v125, 0.0
      %v137 = vsel %vm82, %v135, 0.0
      %v138 = vsel %vm82, %v136, 0.0
      %v139 = vadd.f32 %v137, %v138
      %v140 = vrot.slane %v139, 4
      %v141 = vadd.f32 %v139, %v140
      %v142 = vrot.slane %v141, 2
      %v143 = vadd.f32 %v141, %v142
      %v144 = vrot.slane %v143, 1
      %v145 = vadd.f32 %v143, %v144
      %147 = vset.pattern.permute.xlu0 0
      %148 = vperm.xlu0 %147, %v145
      %v149 = vpop.permute.xlu0 %148
      %151 = vst [vmem:[#allocation5] sm:$0x1] %v149
    $region17: #{tpu_custom_call.1} parent=1 // pred_fallthru
      _
    // Predicated region
    $region18: #{tpu_custom_call.1} parent=1 // pred_check
      _
    $region19: #{tpu_custom_call.1} parent=1 // pred_check_branch
      %153 = sbr.rel (0) target = $region21
    $region20: #{tpu_custom_call.1} parent=1 // pred_region
      %155 = vsyncadd [#allocation6], 0
      %s157 = sshll.u32 [#allocation5], 4
      %s158 = int_to_ptr.vmem [resolvable:$true] %s157
      %s159 = sshll.u32 %s2, 4
      %s160 = int_to_ptr.hbm [resolvable:$true] %s159
      %162 = dma.vmem_to_hbm [thread:$0]  %s158, 16, %s160, [#allocation6]
    $region21: #{tpu_custom_call.1} parent=1 // pred_fallthru
      _
    // Predicated region
    $region22: #{tpu_custom_call.1} parent=1 // pred_check
      _
    $region23: #{tpu_custom_call.1} parent=1 // pred_check_branch
      %164 = sbr.rel (0) target = $region25
    $region24: #{tpu_custom_call.1} parent=1 // pred_region
      %166 = dma.done [#allocation6], 16
    $region25: #{tpu_custom_call.1} parent=1 // pred_fallthru
      _
    %167 = vsyncpa [#allocation6], 1

</llo_original>
